<compile_context>
chip_gen: v6e
topology: v6e:2x2x1
jax: 0.10.0
libtpu: 0.0.40
codegen_flags: <defaults>
</compile_context>

<pallas_src>
import functools

import jax
import jax.numpy as jnp
from jax.experimental import pallas as pl
from jax.experimental.pallas import tpu as pltpu


# ----------------------------------------------------------------------------
# Kernel: one (row-tile i, class-tile j) step of CE with online logsumexp
# ----------------------------------------------------------------------------
def _ce_kernel(pred_ref, pick_ref, out_ref, *scratch,
               num_classes, tile_c, smoothing, mask_last):
    if smoothing > 0.0:
        m_sc, l_sc, sump_sc = scratch
    else:
        m_sc, l_sc = scratch
        sump_sc = None

    j = pl.program_id(1)
    last = pl.num_programs(1) - 1

    @pl.when(j == 0)
    def _init():
        m_sc[...] = jnp.full_like(m_sc, -jnp.inf)
        l_sc[...] = jnp.zeros_like(l_sc)
        if sump_sc is not None:
            sump_sc[...] = jnp.zeros_like(sump_sc)

    p = pred_ref[...].astype(jnp.float32)            # upcast only once in VMEM

    def update(p_lse, p_sum):
        m_prev = m_sc[...]
        m_new = jnp.maximum(m_prev, jnp.max(p_lse, axis=-1, keepdims=True))
        alpha = jnp.exp(m_prev - m_new)              # 0 on the very first tile
        e = jnp.exp(p_lse - m_new)                   # padded cols -> exp(-inf)=0
        m_sc[...] = m_new
        l_sc[...] = l_sc[...] * alpha + jnp.sum(e, axis=-1, keepdims=True)
        if sump_sc is not None:
            sump_sc[...] += jnp.sum(p_sum, axis=-1, keepdims=True)

    if mask_last:                                    # static Python branch
        @pl.when(j < last)
        def _bulk():                                 # unmasked fast path
            update(p, p)

        @pl.when(j == last)
        def _edge():                                 # mask only the last tile
            col = jax.lax.broadcasted_iota(jnp.int32, p.shape, 1)
            valid = col < (num_classes - j * tile_c)
            p_lse = jnp.where(valid, p, -jnp.inf)
            p_sum = jnp.where(valid, p, 0.0) if sump_sc is not None else p
            update(p_lse, p_sum)
    else:
        update(p, p)                                 # no masking compiled in

    @pl.when(j == last)
    def _finalize():
        lse = jnp.log(l_sc[...]) + m_sc[...]         # (TN, 1)
        nll = lse - pick_ref[...]                    # -log_softmax[label]
        if smoothing > 0.0:
            # timm LabelSmoothingCrossEntropy: conf*nll + smoothing*mean(-logp)
            smooth = lse - sump_sc[...] * (1.0 / num_classes)
            rows = (1.0 - smoothing) * nll + smoothing * smooth
        else:
            rows = nll
        out_ref[...] = rows


# ----------------------------------------------------------------------------
# Tile selection & wrapper
# ----------------------------------------------------------------------------
def _round_up(x, m):
    return -(-x // m) * m


def _choose_tiles(N, C, tile_n, tile_c):
    # Row tile: multiple of 8 or the full dim; aim for >= 2 row tiles so the
    # v7x megacore split along the "parallel" axis has work for both cores.
    tn = N if N <= tile_n else max(8, (tile_n // 8) * 8)
    if N > 8 and -(-N // tn) < 2:
        half = _round_up(-(-N // 2), 8)
        if half < N:
            tn = half
    # Class tile cap: ~1M logits elements per block (<= 8192 lanes) so the
    # per-step DMA is multi-MiB but VMEM stays comfortably under v7x's 64 MiB.
    if tile_c is None:
        tile_c = min(8192, max(128, ((1 << 20) // tn) // 128 * 128))
    cap = max(128, (tile_c // 128) * 128)
    if C <= cap:
        return tn, C, False                          # single class tile, no mask
    for t in range(cap, max(cap // 2, 128) - 1, -128):
        if C % t == 0:
            return tn, t, False                      # divides C -> no masking
    return tn, cap, True                             # mask only the last tile


def cross_entropy(prediction, label, smoothing=None, *, tile_n=256, tile_c=None):
    """Mean cross-entropy over rows of `prediction` with integer `label`."""
    # TODO(synk): torch CrossEntropyLoss extras (ignore_index, class weights)
    # are not handled; defaults (no ignored labels, no weights) are assumed.
    N, C = prediction.shape
    smoothing = 0.0 if smoothing is None else float(smoothing)

    tn, tc, mask_last = _choose_tiles(N, C, tile_n, tile_c)
    grid = (-(-N // tn), -(-C // tc))

    # Target logit gathered once outside the kernel (only N elements); removes
    # the per-step compare/select + cross-lane reduce from the hot loop.
    lab = label.astype(jnp.int32).reshape(N, 1)
    pick = jnp.take_along_axis(prediction, lab, axis=-1).astype(jnp.float32)

    # Explicit VMEM budget: 2x double-buffered logits block + ~4 f32 temps
    # + lane-padded (tn,1) blocks/scratch. Clamped to v7x's 64 MiB physical.
    itemsize = jnp.dtype(prediction.dtype).itemsize
    est = (2 * tn * tc * itemsize
           + 4 * tn * tc * 4
           + 8 * tn * 128 * 4)
    vmem_limit = int(min(64 << 20, max(32 << 20, est)))

    kernel = functools.partial(_ce_kernel, num_classes=C, tile_c=tc,
                               smoothing=smoothing, mask_last=mask_last)

    rows = pl.pallas_call(
        kernel,
        out_shape=jax.ShapeDtypeStruct((N, 1), jnp.float32),
        grid_spec=pltpu.PrefetchScalarGridSpec(
            num_scalar_prefetch=0,
            grid=grid,
            in_specs=[
                pl.BlockSpec((tn, tc), lambda i, j: (i, j)),   # logits tile
                pl.BlockSpec((tn, 1), lambda i, j: (i, 0)),    # picked logit
            ],
            out_specs=pl.BlockSpec((tn, 1), lambda i, j: (i, 0)),
            scratch_shapes=[pltpu.VMEM((tn, 1), jnp.float32)]
                           * (3 if smoothing > 0.0 else 2),
        ),
        compiler_params=pltpu.CompilerParams(
            # Row tiles are independent -> split across TCs on v7x;
            # class axis is the online-logsumexp accumulation axis.
            dimension_semantics=("parallel", "arbitrary"),
            vmem_limit_bytes=vmem_limit),
    )(prediction, pick)                              # native dtype in, f32 in-kernel

    return jnp.mean(rows)


class CrossEntropyLoss:
    """JAX/Pallas port of the PyTorch CrossEntropyLoss module."""

    def __init__(self, smoothing=None):
        self.smoothing = smoothing

    def __call__(self, prediction, label):
        return cross_entropy(prediction, label, smoothing=self.smoothing)


# ----------------------------------------------------------------------------
# Pure-JAX reference for verification
# ----------------------------------------------------------------------------
def _ce_ref(prediction, label, smoothing=None):
    logp = jax.nn.log_softmax(prediction.astype(jnp.float32), axis=-1)
    nll = -jnp.take_along_axis(logp, label.astype(jnp.int32)[:, None], axis=-1)[:, 0]
    if smoothing:
        smooth = -jnp.mean(logp, axis=-1)
        rows = (1.0 - smoothing) * nll + smoothing * smooth
    else:
        rows = nll
    return jnp.mean(rows)


if __name__ == "__main__":
    key = jax.random.PRNGKey(0)
    k1, k2, k3, k4, k5, k6 = jax.random.split(key, 6)

    # Case 1: small f32 head, single block, no smoothing (torch default path).
    N1, C1 = 8, 16
    pred1 = jax.random.normal(k1, (N1, C1), jnp.float32)
    lab1 = jax.random.randint(k2, (N1,), 0, C1, jnp.int32)
    out1 = CrossEntropyLoss(smoothing=None)(pred1, lab1)
    ref1 = _ce_ref(pred1, lab1, None)

    # Case 2: bf16 logits, non-divisible class dim -> masked last class tile,
    # multiple row tiles, label-smoothing path (tiny tiles to exercise the grid).
    N2, C2, SMOOTH = 16, 300, 0.1
    pred2 = jax.random.normal(k3, (N2, C2), jnp.float32).astype(jnp.bfloat16)
    lab2 = jax.random.randint(k4, (N2,), 0, C2, jnp.int32)
    out2 = cross_entropy(pred2, lab2, smoothing=SMOOTH, tile_n=8, tile_c=128)
    ref2 = _ce_ref(pred2, lab2, SMOOTH)

    # Case 3: class dim divisible by the class tile -> fully unmasked multi-tile
    # path, multiple row tiles, no smoothing.
    N3, C3 = 32, 512
    pred3 = jax.random.normal(k5, (N3, C3), jnp.float32)
    lab3 = jax.random.randint(k6, (N3,), 0, C3, jnp.int32)
    out3 = cross_entropy(pred3, lab3, tile_n=8, tile_c=128)
    ref3 = _ce_ref(pred3, lab3, None)

    out1, ref1, out2, ref2, out3, ref3 = jax.block_until_ready(
        (out1, ref1, out2, ref2, out3, ref3))

    assert jnp.abs(out1 - ref1) < 1e-5, (out1, ref1)
    assert jnp.abs(out2 - ref2) < 1e-3, (out2, ref2)
    assert jnp.abs(out3 - ref3) < 1e-5, (out3, ref3)
    print("KERNEL_OK")
</pallas_src>

<mosaic_0001>
module attributes {stable_mosaic.version = 11 : i64} {
  func.func @_ce_kernel(%arg0: i32, %arg1: i32, %arg2: memref<8x16xf32, #tpu.memory_space<vmem>>, %arg3: memref<8x1xf32, #tpu.memory_space<vmem>>, %arg4: memref<8x1xf32, #tpu.memory_space<vmem>>, %arg5: memref<8x1xf32, #tpu.memory_space<vmem>>, %arg6: memref<8x1xf32, #tpu.memory_space<vmem>>) attributes {dimension_semantics = [#tpu.dimension_semantics<parallel>, #tpu.dimension_semantics<arbitrary>], iteration_bounds = array<i64: 1, 1>, scalar_prefetch = 0 : i64, scratch_operands = 2 : i64, tpu.core_type = #tpu.core_type<tc>, window_params = [{transform_indices = @transform_0, window_bounds = array<i64: 8, 16>}, {transform_indices = @transform_1, window_bounds = array<i64: 8, 1>}, {transform_indices = @transform_2, window_bounds = array<i64: 8, 1>}]} {
    %c0_i32 = arith.constant 0 : i32
    %0 = arith.cmpi eq, %arg1, %c0_i32 : i32
    %1 = arith.extui %0 : i1 to i32
    %c0_i32_0 = arith.constant 0 : i32
    %2 = arith.cmpi ne, %1, %c0_i32_0 : i32
    scf.if %2 {
      %cst_13 = arith.constant 0xFF800000 : f32
      %23 = vector.broadcast %cst_13 : f32 to vector<8x1xf32>
      %c0_14 = arith.constant 0 : index
      %c0_15 = arith.constant 0 : index
      %24 = vector.load %arg5[%c0_14, %c0_15] : memref<8x1xf32, #tpu.memory_space<vmem>>, vector<8x1xf32>
      tpu.vector_store %arg5[%c0_14, %c0_15], %23 {strides = array<i32>} : memref<8x1xf32, #tpu.memory_space<vmem>>, vector<8x1xf32>,
      %cst_16 = arith.constant 0.000000e+00 : f32
      %25 = vector.broadcast %cst_16 : f32 to vector<8x1xf32>
      %c0_17 = arith.constant 0 : index
      %c0_18 = arith.constant 0 : index
      %26 = vector.load %arg6[%c0_17, %c0_18] : memref<8x1xf32, #tpu.memory_space<vmem>>, vector<8x1xf32>
      tpu.vector_store %arg6[%c0_17, %c0_18], %25 {strides = array<i32>} : memref<8x1xf32, #tpu.memory_space<vmem>>, vector<8x1xf32>,
    } else {
    }
    %c0 = arith.constant 0 : index
    %c0_1 = arith.constant 0 : index
    %3 = vector.load %arg2[%c0, %c0_1] : memref<8x16xf32, #tpu.memory_space<vmem>>, vector<8x16xf32>
    %c0_2 = arith.constant 0 : index
    %c0_3 = arith.constant 0 : index
    %4 = vector.load %arg5[%c0_2, %c0_3] : memref<8x1xf32, #tpu.memory_space<vmem>>, vector<8x1xf32>
    %cst = arith.constant dense<0xFF800000> : vector<8xf32>
    %5 = vector.multi_reduction <maximumf>, %3, %cst [1] : vector<8x16xf32> to vector<8xf32>
    %6 = vector.shape_cast %5 : vector<8xf32> to vector<8x1xf32>
    %7 = arith.maximumf %4, %6 : vector<8x1xf32>
    %8 = arith.subf %4, %7 : vector<8x1xf32>
    %9 = math.exp %8 : vector<8x1xf32>
    %10 = vector.broadcast %7 : vector<8x1xf32> to vector<8x16xf32>
    %11 = arith.subf %3, %10 : vector<8x16xf32>
    %12 = math.exp %11 : vector<8x16xf32>
    %c0_4 = arith.constant 0 : index
    %c0_5 = arith.constant 0 : index
    %13 = vector.load %arg5[%c0_4, %c0_5] : memref<8x1xf32, #tpu.memory_space<vmem>>, vector<8x1xf32>
    tpu.vector_store %arg5[%c0_4, %c0_5], %7 {strides = array<i32>} : memref<8x1xf32, #tpu.memory_space<vmem>>, vector<8x1xf32>,
    %c0_6 = arith.constant 0 : index
    %c0_7 = arith.constant 0 : index
    %14 = vector.load %arg6[%c0_6, %c0_7] : memref<8x1xf32, #tpu.memory_space<vmem>>, vector<8x1xf32>
    %15 = arith.mulf %14, %9 : vector<8x1xf32>
    %cst_8 = arith.constant dense<0.000000e+00> : vector<8xf32>
    %16 = vector.multi_reduction <add>, %12, %cst_8 [1] : vector<8x16xf32> to vector<8xf32>
    %17 = vector.shape_cast %16 : vector<8xf32> to vector<8x1xf32>
    %18 = arith.addf %15, %17 : vector<8x1xf32>
    %c0_9 = arith.constant 0 : index
    %c0_10 = arith.constant 0 : index
    %19 = vector.load %arg6[%c0_9, %c0_10] : memref<8x1xf32, #tpu.memory_space<vmem>>, vector<8x1xf32>
    tpu.vector_store %arg6[%c0_9, %c0_10], %18 {strides = array<i32>} : memref<8x1xf32, #tpu.memory_space<vmem>>, vector<8x1xf32>,
    %c0_i32_11 = arith.constant 0 : i32
    %20 = arith.cmpi eq, %arg1, %c0_i32_11 : i32
    %21 = arith.extui %20 : i1 to i32
    %c0_i32_12 = arith.constant 0 : i32
    %22 = arith.cmpi ne, %21, %c0_i32_12 : i32
    scf.if %22 {
      %c0_13 = arith.constant 0 : index
      %c0_14 = arith.constant 0 : index
      %23 = vector.load %arg6[%c0_13, %c0_14] : memref<8x1xf32, #tpu.memory_space<vmem>>, vector<8x1xf32>
      %24 = math.log %23 : vector<8x1xf32>
      %c0_15 = arith.constant 0 : index
      %c0_16 = arith.constant 0 : index
      %25 = vector.load %arg5[%c0_15, %c0_16] : memref<8x1xf32, #tpu.memory_space<vmem>>, vector<8x1xf32>
      %26 = arith.addf %24, %25 : vector<8x1xf32>
      %c0_17 = arith.constant 0 : index
      %c0_18 = arith.constant 0 : index
      %27 = vector.load %arg3[%c0_17, %c0_18] : memref<8x1xf32, #tpu.memory_space<vmem>>, vector<8x1xf32>
      %28 = arith.subf %26, %27 : vector<8x1xf32>
      %c0_19 = arith.constant 0 : index
      %c0_20 = arith.constant 0 : index
      %29 = vector.load %arg4[%c0_19, %c0_20] : memref<8x1xf32, #tpu.memory_space<vmem>>, vector<8x1xf32>
      tpu.vector_store %arg4[%c0_19, %c0_20], %28 {strides = array<i32>} : memref<8x1xf32, #tpu.memory_space<vmem>>, vector<8x1xf32>,
    } else {
    }
    return
  }
  func.func @transform_0(%arg0: i32, %arg1: i32) -> (i32, i32) {
    %c0_i32 = arith.constant 0 : i32
    return %arg0, %arg1 : i32, i32
  }
  func.func @transform_1(%arg0: i32, %arg1: i32) -> (i32, i32) {
    %c0_i32 = arith.constant 0 : i32
    %c0_i32_0 = arith.constant 0 : i32
    return %arg0, %c0_i32 : i32, i32
  }
  func.func @transform_2(%arg0: i32, %arg1: i32) -> (i32, i32) {
    %c0_i32 = arith.constant 0 : i32
    %c0_i32_0 = arith.constant 0 : i32
    return %arg0, %c0_i32 : i32, i32
  }
}

</mosaic_0001>

<llo_original>
// kernel: tpu_custom_call.1
$region0: #{tpu_custom_call.1}
  #allocation0 [shape = 'u32[]', space=smem, size = 0x4, offset = 0x4, fixed_abs, tag = 'smem constant byte address 0x4 - core index']
  #allocation1 [shape = 'u32[144,128]{1,0:T(1,128)}', space=vmem, size = 0x12000, scoped, tag = 'internal scratch']
  #allocation2 [shape = 'f32[8,1]{1,0:T(8,128)}', space=vmem, size = 0x1000, scoped, tag = 'scratch operand']
  #allocation3 [shape = 'f32[8,1]{1,0:T(8,128)}', space=vmem, size = 0x1000, scoped, tag = 'scratch operand']
  %s0 = inlined_call_operand.vmem [shape: f32[8,16], index: 0, kind: input, shape index: {}]
  %s1 = inlined_call_operand.vmem [shape: f32[8,1], index: 1, kind: input, shape index: {}]
  %s2 = inlined_call_operand.vmem [shape: f32[8,1], index: 2, kind: output, shape index: {}]
  %s3 = sld [smem:[#allocation0]]
  $region26: #{tpu_custom_call.1} parent=0
    _
  %s5 = ssub.s32 1, %s3
  %s6 = scalar_select 0, %s5, %s3
  // Predicated region
  $region2: #{tpu_custom_call.1} parent=0 // pred_check
    _
  $region3: #{tpu_custom_call.1} parent=0 // pred_check_branch
    %8 = sbr.rel (0) target = $region5
  $region4: #{tpu_custom_call.1} parent=0 // pred_region
    _
  $region5: #{tpu_custom_call.1} parent=0 // pred_fallthru
    _
  // Predicated region
  $region6: #{tpu_custom_call.1} parent=0 // pred_check
    _
  $region7: #{tpu_custom_call.1} parent=0 // pred_check_branch
    %10 = sbr.rel (0) target = $region9
  $region8: #{tpu_custom_call.1} parent=0 // pred_region
    _
  $region9: #{tpu_custom_call.1} parent=0 // pred_fallthru
    _
  %p11 = scmp.eq.s32.totalorder 0, 0
  // Predicated region
  $region10: #{tpu_custom_call.1} parent=0 // pred_check
    %p12 = pneg %p11
  $region11: #{tpu_custom_call.1} parent=0 // pred_check_branch
    %14 = sbr.rel (%p12) target = $region13
  $region12: #{tpu_custom_call.1} parent=0 // pred_region
    %vm15 = vcmask 7168
    %16 = vst.msk [vmem:[#allocation2] sm:$0xff] %vm15, -inf
    %17 = vst.msk [vmem:[#allocation3] sm:$0xff] %vm15, 0.0
  $region13: #{tpu_custom_call.1} parent=0 // pred_fallthru
    _
  %v18 = vld [vmem:[%s0] sm:$0xff]
  %v19 = vld [vmem:[#allocation2] sm:$0xff]
  %vm20 = vcmask 130048
  %v21 = vsel %vm20, %v18, -inf
  %22 = vmax.xlane.f32.xlu0 %v21
  %v23 = vpop.xlane.xlu0 %22
  %v24 = vmax.f32 %v19, %v23
  %v25 = vsub.f32 %v19, %v24
  %v26 = vmul.f32 %v25, 1.442695
  %v27 = vpow.pop %v26
  %29 = vset.pattern.permute.xlu0 0
  %30 = vperm.xlu0 %29, %v24
  %v31 = vpop.permute.xlu0 %30
  %v33 = vsub.f32 %v18, %v31
  %v34 = vmul.f32 %v33, 1.442695
  %v35 = vpow.pop %v34
  %vm36 = vcmask 7168
  %37 = vst.msk [vmem:[#allocation2] sm:$0xff] %vm36, %v24
  %v38 = vld [vmem:[#allocation3] sm:$0xff]
  %v39 = vmul.f32 %v38, %v27
  %v40 = vsel %vm20, %v35, 0.0
  %41 = vadd.xlane.f32.xlu0 %v40
  %v42 = vpop.xlane.xlu0 %41
  %v43 = vadd.f32 %v39, %v42
  %44 = vst.msk [vmem:[#allocation3] sm:$0xff] %vm36, %v43
  // Predicated region
  $region14: #{tpu_custom_call.1} parent=0 // pred_check
    %p45 = pneg %p11
  $region15: #{tpu_custom_call.1} parent=0 // pred_check_branch
    %47 = sbr.rel (%p45) target = $region17
  $region16: #{tpu_custom_call.1} parent=0 // pred_region
    %v48 = vld [vmem:[#allocation3] sm:$0xff]
    %v49 = vlog2.pop %v48
    %v50 = vmul.f32 %v49, 0.6931472
    %v51 = vld [vmem:[#allocation2] sm:$0xff]
    %v52 = vadd.f32 %v50, %v51
    %v53 = vld [vmem:[%s1] sm:$0xff]
    %v54 = vsub.f32 %v52, %v53
    %55 = vst.msk [vmem:[%s2] sm:$0xff] %vm36, %v54
  $region17: #{tpu_custom_call.1} parent=0 // pred_fallthru
    _
  // Predicated region
  $region18: #{tpu_custom_call.1} parent=0 // pred_check
    _
  $region19: #{tpu_custom_call.1} parent=0 // pred_check_branch
    %57 = sbr.rel (0) target = $region21
  $region20: #{tpu_custom_call.1} parent=0 // pred_region
    _
  $region21: #{tpu_custom_call.1} parent=0 // pred_fallthru
    _
  // Predicated region
  $region22: #{tpu_custom_call.1} parent=0 // pred_check
    _
  $region23: #{tpu_custom_call.1} parent=0 // pred_check_branch
    %59 = sbr.rel (0) target = $region25
  $region24: #{tpu_custom_call.1} parent=0 // pred_region
    _
  $region25: #{tpu_custom_call.1} parent=0 // pred_fallthru
    _

</llo_original>
